<compile_context>
chip_gen: v6e
topology: v6e:2x2x1
jax: 0.10.0
libtpu: 0.0.40
codegen_flags: <defaults>
</compile_context>

<pallas_src>
import math
import functools

import jax
import jax.numpy as jnp
from jax import lax
from jax.experimental import pallas as pl
from jax.experimental.pallas import tpu as pltpu


# ----------------------------- Pallas kernel --------------------------------
def lstm_kernel(idlen_ref, embproj_ref, whh_f_ref, w12_ref, b12_ref, out_ref, *, T, B):
    # idlen_ref   : (T*B + B, 1) int32  rows [0:T*B] time-major token ids, rows [T*B:] lengths
    # embproj_ref : (Vpad, 8U)   bf16   rows [0:V] = embedding @ [Wih_f^T | Wih_b^T];
    #                                   last row = [b_f | b_b]; middle rows zero padding
    # whh_f_ref   : (U, 4U)      bf16   forward recurrent weight (pre-transposed)
    # w12_ref     : (2U, C)      bf16   fused fc1 @ fc2 (dropout identity)
    # b12_ref     : (1, C)       f32    fused head bias
    Vrows = embproj_ref.shape[0]
    U = whh_f_ref.shape[0]
    fourU = 4 * U
    TB = T * B

    idlen = idlen_ref[...]
    ids = idlen[:TB, :]                       # (T*B, 1) time-major token ids
    lengths = idlen[TB:TB + B, :]             # (B, 1)

    # ---- embedding gather + input proj (both dirs) + gate bias: ONE MXU op --
    # one-hot rows select embedding rows; an always-on last column selects the
    # bias row, so xg already contains x@Wih + b for forward AND backward gates.
    iota = lax.broadcasted_iota(jnp.int32, (TB, Vrows), 1)
    onehot = jnp.logical_or(ids == iota, iota == Vrows - 1).astype(jnp.bfloat16)
    xg = jnp.dot(onehot, embproj_ref[...],
                 preferred_element_type=jnp.float32)          # (T*B, 8U) f32

    whh_f = whh_f_ref[...]                                    # (U, 4U) bf16

    # ---- forward-direction masked recurrence (fully unrolled, T static) -----
    # TODO(synk): state/gate math kept f32 for v5e portability (no bf16 VPU/EUP);
    # on v6e/v7x it could be held in bf16 to drop the per-step cast on the chain.
    h = jnp.zeros((B, U), jnp.float32)
    c = jnp.zeros((B, U), jnp.float32)
    for t in range(T):
        g = xg[t * B:(t + 1) * B, :fourU] + jnp.dot(
            h.astype(jnp.bfloat16), whh_f, preferred_element_type=jnp.float32)
        sig = jax.nn.sigmoid(g)                               # full-register EUP
        th = jnp.tanh(g)
        c_new = sig[:, U:2 * U] * c + sig[:, :U] * th[:, 2 * U:3 * U]
        h_new = sig[:, 3 * U:] * jnp.tanh(c_new)
        m = lengths > t                                       # (B, 1) bool
        h = jnp.where(m, h_new, h)
        c = jnp.where(m, c_new, c)

    # packed/pad_packed: output[:, -1, :] is nonzero only where length == T.
    m_last = lengths > (T - 1)
    rel_f = jnp.where(m_last, jnp.maximum(h, 0.0), 0.0)       # ReLU + packing zero

    # ---- backward direction: only its value at t = T-1 is consumed ----------
    # zero initial state => h@Whh_b and f*c terms are exactly zero.
    gb = xg[(T - 1) * B:TB, fourU:]                           # (B, 4U), bias folded in
    sigb = jax.nn.sigmoid(gb)
    thb = jnp.tanh(gb)
    h_b = sigb[:, 3 * U:] * jnp.tanh(sigb[:, :U] * thb[:, 2 * U:3 * U])
    rel_b = jnp.where(m_last, jnp.maximum(h_b, 0.0), 0.0)

    # ---- fused fc1+fc2 head, no lane concat of the two direction halves -----
    w12 = w12_ref[...]
    out_ref[...] = (
        jnp.dot(rel_f.astype(jnp.bfloat16), w12[:U, :], preferred_element_type=jnp.float32)
        + jnp.dot(rel_b.astype(jnp.bfloat16), w12[U:, :], preferred_element_type=jnp.float32)
        + b12_ref[...])


# ------------------------------ wrapper ---------------------------------------
@jax.jit
def lstm_forward(text, text_lengths, kparams):
    """text: (B, T) int32 token ids; text_lengths: (B,) int32 (sorted descending)."""
    B, T = text.shape
    C = kparams["w12"].shape[1]

    # the only wrapper-side op: pack time-major ids + lengths into one tiny int32 array
    idlen = jnp.concatenate(
        [text.T.reshape(T * B, 1), text_lengths.reshape(B, 1)], axis=0
    ).astype(jnp.int32)

    # NOTE: at these sizes every operand fits VMEM trivially.
    # TODO(synk): for a realistic vocab (e.g. 25k x 300) do NOT pull the table into
    # a VMEM input (blows v7x's 64 MiB): row-gather via HBM DMA instead; for real
    # batch sizes add a leading "parallel" batch grid axis (v7x has 2 TensorCores).
    vmem = pl.BlockSpec(memory_space=pltpu.MemorySpace.VMEM)
    return pl.pallas_call(
        functools.partial(lstm_kernel, T=T, B=B),
        out_shape=jax.ShapeDtypeStruct((B, C), jnp.float32),
        in_specs=[vmem] * 5,
        out_specs=vmem,
    )(idlen, kparams["embproj"], kparams["whh_f"], kparams["w12"], kparams["b12"])


def make_kernel_params(params):
    """Derived/fused weights, computed ONCE (not per forward call)."""
    E, fourU = params["wih_f_T"].shape
    eightU = 2 * fourU
    V = params["embedding"].shape[0]

    wih_fb = jnp.concatenate([params["wih_f_T"], params["wih_b_T"]], axis=1)   # (E, 8U)
    b_fb = jnp.concatenate([params["b_f"], params["b_b"]], axis=1)             # (1, 8U)
    embproj = params["embedding"] @ wih_fb                                     # (V, 8U) f32
    # pad row count to a sublane multiple; the bias row goes LAST so the kernel
    # can address it as Vrows-1 (padding rows are zero and never selected).
    Vpad = ((V + 1 + 7) // 8) * 8
    pad = jnp.zeros((Vpad - 1 - V, eightU), jnp.float32)
    embproj_aug = jnp.concatenate([embproj, pad, b_fb], axis=0)                # (Vpad, 8U)

    # fused fc1*fc2 (valid ONLY because dropout is identity: p=0 / eval mode)
    w12 = params["w1_T"] @ params["w2_T"]                                      # (2U, C)
    b12 = params["b1"] @ params["w2_T"] + params["b2"]                         # (1, C)

    return dict(
        embproj=embproj_aug.astype(jnp.bfloat16),
        whh_f=params["whh_f_T"].astype(jnp.bfloat16),
        w12=w12.astype(jnp.bfloat16),
        b12=b12,
    )


# --------------------------- pure-JAX reference ------------------------------
def reference_forward(text, text_lengths, params):
    emb = jnp.take(params["embedding"], text, axis=0)
    B, T, _E = emb.shape
    U = params["whh_f_T"].shape[0]
    mask = (jnp.arange(T)[None, :] < text_lengths[:, None]).astype(jnp.float32)

    def cell(x_t, h, c, wih_T, whh_T, b):
        gates = x_t @ wih_T + h @ whh_T + b
        i = jax.nn.sigmoid(gates[:, :U])
        f = jax.nn.sigmoid(gates[:, U:2 * U])
        g = jnp.tanh(gates[:, 2 * U:3 * U])
        o = jax.nn.sigmoid(gates[:, 3 * U:])
        c2 = f * c + i * g
        return o * jnp.tanh(c2), c2

    h = jnp.zeros((B, U)); c = jnp.zeros((B, U))
    for t in range(T):
        hn, cn = cell(emb[:, t], h, c, params["wih_f_T"], params["whh_f_T"], params["b_f"])
        m = mask[:, t:t + 1]
        h = m * hn + (1.0 - m) * h
        c = m * cn + (1.0 - m) * c
    out_f = mask[:, T - 1:T] * h
    hb, _ = cell(emb[:, T - 1], jnp.zeros((B, U)), jnp.zeros((B, U)),
                 params["wih_b_T"], params["whh_b_T"], params["b_b"])
    out_b = mask[:, T - 1:T] * hb
    feat = jnp.concatenate([out_f, out_b], axis=-1)
    rel = jnp.maximum(feat, 0.0)
    d1 = rel @ params["w1_T"] + params["b1"]
    return d1 @ params["w2_T"] + params["b2"]


# ------------------------------ param init -----------------------------------
def init_params(key, vocab_size, E, U, H, C, pad_index):
    ks = jax.random.split(key, 13)

    def u(k, shape, s):
        return jax.random.uniform(k, shape, jnp.float32, -s, s)

    emb = jax.random.normal(ks[0], (vocab_size, E), jnp.float32)
    emb = emb.at[pad_index].set(0.0)                  # padding_idx row = 0

    kU = 1.0 / math.sqrt(U)
    wih_f = u(ks[1], (4 * U, E), kU); whh_f = u(ks[2], (4 * U, U), kU)
    bih_f = u(ks[3], (4 * U,), kU);   bhh_f = u(ks[4], (4 * U,), kU)
    wih_b = u(ks[5], (4 * U, E), kU); whh_b = u(ks[6], (4 * U, U), kU)
    bih_b = u(ks[7], (4 * U,), kU);   bhh_b = u(ks[8], (4 * U,), kU)

    k1 = 1.0 / math.sqrt(2 * U)
    k2 = 1.0 / math.sqrt(H)
    w1 = u(ks[9], (H, 2 * U), k1);  b1 = u(ks[10], (H,), k1)
    w2 = u(ks[11], (C, H), k2);     b2 = u(ks[12], (C,), k2)

    return dict(
        embedding=emb,
        wih_f_T=wih_f.T, whh_f_T=whh_f.T, b_f=(bih_f + bhh_f).reshape(1, 4 * U),
        wih_b_T=wih_b.T, whh_b_T=whh_b.T, b_b=(bih_b + bhh_b).reshape(1, 4 * U),
        w1_T=w1.T, b1=b1.reshape(1, H),
        w2_T=w2.T, b2=b2.reshape(1, C),
    )


# ---------------------------------- main --------------------------------------
if __name__ == "__main__":
    # hyperparameters (consistent with the module's __init__)
    vocab_size, embedding_dim, lstm_units = 50, 16, 32
    hidden_dim, num_classes = 32, 4
    lstm_layers, bidirectional, dropout_p, pad_index = 1, True, 0.0, 0
    B, T = 2, 8

    key = jax.random.PRNGKey(0)
    k_param, k_tok = jax.random.split(key)
    params = init_params(k_param, vocab_size, embedding_dim, lstm_units,
                         hidden_dim, num_classes, pad_index)
    kparams = make_kernel_params(params)        # fused/derived weights: once, not per call

    # lengths sorted descending (pack_padded_sequence's enforce_sorted=True)
    text_lengths = jnp.array([8, 5], dtype=jnp.int32)
    tokens = jax.random.randint(k_tok, (B, T), 1, vocab_size, dtype=jnp.int32)
    valid = jnp.arange(T)[None, :] < text_lengths[:, None]
    text = jnp.where(valid, tokens, pad_index).astype(jnp.int32)

    preds = lstm_forward(text, text_lengths, kparams)
    preds = jax.block_until_ready(preds)

    ref = reference_forward(text, text_lengths, params)
    # Kernel feeds the MXU bf16 operands (f32 accumulation), so compare against
    # the f32 reference with a correspondingly widened tolerance.
    if not jnp.allclose(preds, ref, atol=2e-2, rtol=2e-2):
        raise AssertionError("Pallas kernel does not match reference")

    print("KERNEL_OK")
</pallas_src>

<mosaic_0001>
module attributes {stable_mosaic.version = 11 : i64} {
  func.func @lstm_kernel(%arg0: memref<18x1xi32, #tpu.memory_space<vmem>>, %arg1: memref<56x256xbf16, #tpu.memory_space<vmem>>, %arg2: memref<32x128xbf16, #tpu.memory_space<vmem>>, %arg3: memref<64x4xbf16, #tpu.memory_space<vmem>>, %arg4: memref<1x4xf32, #tpu.memory_space<vmem>>, %arg5: memref<2x4xf32, #tpu.memory_space<vmem>>) attributes {dimension_semantics = [], scalar_prefetch = 0 : i64, scratch_operands = 0 : i64, tpu.core_type = #tpu.core_type<tc>} {
    %c0 = arith.constant 0 : index
    %c0_0 = arith.constant 0 : index
    %0 = vector.load %arg0[%c0, %c0_0] : memref<18x1xi32, #tpu.memory_space<vmem>>, vector<18x1xi32>
    %1 = vector.extract_strided_slice %0 {offsets = [0, 0], sizes = [16, 1], strides = [1, 1]} : vector<18x1xi32> to vector<16x1xi32>
    %2 = vector.extract_strided_slice %0 {offsets = [16, 0], sizes = [2, 1], strides = [1, 1]} : vector<18x1xi32> to vector<2x1xi32>
    %3 = tpu.iota {dimensions = array<i32: 1>} : vector<16x56xi32>
    %4 = vector.broadcast %1 : vector<16x1xi32> to vector<16x56xi32>
    %5 = arith.cmpi eq, %4, %3 : vector<16x56xi32>
    %c55_i32 = arith.constant 55 : i32
    %6 = vector.broadcast %c55_i32 : i32 to vector<16x56xi32>
    %7 = arith.cmpi eq, %3, %6 : vector<16x56xi32>
    %8 = arith.ori %5, %7 : vector<16x56xi1>
    %9 = arith.extui %8 : vector<16x56xi1> to vector<16x56xi32>
    %10 = arith.sitofp %9 : vector<16x56xi32> to vector<16x56xf32>
    %11 = arith.truncf %10 : vector<16x56xf32> to vector<16x56xbf16>
    %c0_1 = arith.constant 0 : index
    %c0_2 = arith.constant 0 : index
    %12 = vector.load %arg1[%c0_1, %c0_2] : memref<56x256xbf16, #tpu.memory_space<vmem>>, vector<56x256xbf16>
    %cst = arith.constant dense<0.000000e+00> : vector<16x256xf32>
    %13 = tpu.matmul %11, %12, %cst {dimension_numbers = #tpu.dot_dimension_numbers<[1], [0], [0], [1], [0, 0, 1, 1], [], []>} : vector<16x56xbf16>, vector<56x256xbf16>, vector<16x256xf32> -> vector<16x256xf32>
    %c0_3 = arith.constant 0 : index
    %c0_4 = arith.constant 0 : index
    %14 = vector.load %arg2[%c0_3, %c0_4] : memref<32x128xbf16, #tpu.memory_space<vmem>>, vector<32x128xbf16>
    %cst_5 = arith.constant 0.000000e+00 : f32
    %15 = vector.broadcast %cst_5 : f32 to vector<2x32xf32>
    %cst_6 = arith.constant 0.000000e+00 : f32
    %16 = vector.broadcast %cst_6 : f32 to vector<2x32xf32>
    %17 = vector.extract_strided_slice %13 {offsets = [0, 0], sizes = [2, 128], strides = [1, 1]} : vector<16x256xf32> to vector<2x128xf32>
    %18 = arith.truncf %15 : vector<2x32xf32> to vector<2x32xbf16>
    %cst_7 = arith.constant dense<0.000000e+00> : vector<2x128xf32>
    %19 = tpu.matmul %18, %14, %cst_7 {dimension_numbers = #tpu.dot_dimension_numbers<[1], [0], [0], [1], [0, 0, 1, 1], [], []>} : vector<2x32xbf16>, vector<32x128xbf16>, vector<2x128xf32> -> vector<2x128xf32>
    %20 = arith.addf %17, %19 : vector<2x128xf32>
    %21 = arith.negf %20 : vector<2x128xf32>
    %22 = math.exp %21 : vector<2x128xf32>
    %cst_8 = arith.constant 1.000000e+00 : f32
    %23 = vector.broadcast %cst_8 : f32 to vector<2x128xf32>
    %24 = arith.addf %23, %22 : vector<2x128xf32>
    %25 = arith.divf %23, %24 : vector<2x128xf32>
    %26 = math.tanh %20 : vector<2x128xf32>
    %27 = vector.extract_strided_slice %25 {offsets = [0, 32], sizes = [2, 32], strides = [1, 1]} : vector<2x128xf32> to vector<2x32xf32>
    %28 = arith.mulf %27, %16 : vector<2x32xf32>
    %29 = vector.extract_strided_slice %25 {offsets = [0, 0], sizes = [2, 32], strides = [1, 1]} : vector<2x128xf32> to vector<2x32xf32>
    %30 = vector.extract_strided_slice %26 {offsets = [0, 64], sizes = [2, 32], strides = [1, 1]} : vector<2x128xf32> to vector<2x32xf32>
    %31 = arith.mulf %29, %30 : vector<2x32xf32>
    %32 = arith.addf %28, %31 : vector<2x32xf32>
    %33 = vector.extract_strided_slice %25 {offsets = [0, 96], sizes = [2, 32], strides = [1, 1]} : vector<2x128xf32> to vector<2x32xf32>
    %34 = math.tanh %32 : vector<2x32xf32>
    %35 = arith.mulf %33, %34 : vector<2x32xf32>
    %c0_i32 = arith.constant 0 : i32
    %36 = vector.broadcast %c0_i32 : i32 to vector<2x1xi32>
    %37 = arith.cmpi sgt, %2, %36 : vector<2x1xi32>
    %38 = vector.shape_cast %37 : vector<2x1xi1> to vector<2x1xi1>
    %39 = vector.broadcast %38 : vector<2x1xi1> to vector<2x32xi1>
    %40 = arith.select %39, %35, %15 : vector<2x32xi1>, vector<2x32xf32>
    %41 = vector.shape_cast %37 : vector<2x1xi1> to vector<2x1xi1>
    %42 = vector.broadcast %41 : vector<2x1xi1> to vector<2x32xi1>
    %43 = arith.select %42, %32, %16 : vector<2x32xi1>, vector<2x32xf32>
    %44 = vector.extract_strided_slice %13 {offsets = [2, 0], sizes = [2, 128], strides = [1, 1]} : vector<16x256xf32> to vector<2x128xf32>
    %45 = arith.truncf %40 : vector<2x32xf32> to vector<2x32xbf16>
    %cst_9 = arith.constant dense<0.000000e+00> : vector<2x128xf32>
    %46 = tpu.matmul %45, %14, %cst_9 {dimension_numbers = #tpu.dot_dimension_numbers<[1], [0], [0], [1], [0, 0, 1, 1], [], []>} : vector<2x32xbf16>, vector<32x128xbf16>, vector<2x128xf32> -> vector<2x128xf32>
    %47 = arith.addf %44, %46 : vector<2x128xf32>
    %48 = arith.negf %47 : vector<2x128xf32>
    %49 = math.exp %48 : vector<2x128xf32>
    %cst_10 = arith.constant 1.000000e+00 : f32
    %50 = vector.broadcast %cst_10 : f32 to vector<2x128xf32>
    %51 = arith.addf %50, %49 : vector<2x128xf32>
    %52 = arith.divf %50, %51 : vector<2x128xf32>
    %53 = math.tanh %47 : vector<2x128xf32>
    %54 = vector.extract_strided_slice %52 {offsets = [0, 32], sizes = [2, 32], strides = [1, 1]} : vector<2x128xf32> to vector<2x32xf32>
    %55 = arith.mulf %54, %43 : vector<2x32xf32>
    %56 = vector.extract_strided_slice %52 {offsets = [0, 0], sizes = [2, 32], strides = [1, 1]} : vector<2x128xf32> to vector<2x32xf32>
    %57 = vector.extract_strided_slice %53 {offsets = [0, 64], sizes = [2, 32], strides = [1, 1]} : vector<2x128xf32> to vector<2x32xf32>
    %58 = arith.mulf %56, %57 : vector<2x32xf32>
    %59 = arith.addf %55, %58 : vector<2x32xf32>
    %60 = vector.extract_strided_slice %52 {offsets = [0, 96], sizes = [2, 32], strides = [1, 1]} : vector<2x128xf32> to vector<2x32xf32>
    %61 = math.tanh %59 : vector<2x32xf32>
    %62 = arith.mulf %60, %61 : vector<2x32xf32>
    %c1_i32 = arith.constant 1 : i32
    %63 = vector.broadcast %c1_i32 : i32 to vector<2x1xi32>
    %64 = arith.cmpi sgt, %2, %63 : vector<2x1xi32>
    %65 = vector.shape_cast %64 : vector<2x1xi1> to vector<2x1xi1>
    %66 = vector.broadcast %65 : vector<2x1xi1> to vector<2x32xi1>
    %67 = arith.select %66, %62, %40 : vector<2x32xi1>, vector<2x32xf32>
    %68 = vector.shape_cast %64 : vector<2x1xi1> to vector<2x1xi1>
    %69 = vector.broadcast %68 : vector<2x1xi1> to vector<2x32xi1>
    %70 = arith.select %69, %59, %43 : vector<2x32xi1>, vector<2x32xf32>
    %71 = vector.extract_strided_slice %13 {offsets = [4, 0], sizes = [2, 128], strides = [1, 1]} : vector<16x256xf32> to vector<2x128xf32>
    %72 = arith.truncf %67 : vector<2x32xf32> to vector<2x32xbf16>
    %cst_11 = arith.constant dense<0.000000e+00> : vector<2x128xf32>
    %73 = tpu.matmul %72, %14, %cst_11 {dimension_numbers = #tpu.dot_dimension_numbers<[1], [0], [0], [1], [0, 0, 1, 1], [], []>} : vector<2x32xbf16>, vector<32x128xbf16>, vector<2x128xf32> -> vector<2x128xf32>
    %74 = arith.addf %71, %73 : vector<2x128xf32>
    %75 = arith.negf %74 : vector<2x128xf32>
    %76 = math.exp %75 : vector<2x128xf32>
    %cst_12 = arith.constant 1.000000e+00 : f32
    %77 = vector.broadcast %cst_12 : f32 to vector<2x128xf32>
    %78 = arith.addf %77, %76 : vector<2x128xf32>
    %79 = arith.divf %77, %78 : vector<2x128xf32>
    %80 = math.tanh %74 : vector<2x128xf32>
    %81 = vector.extract_strided_slice %79 {offsets = [0, 32], sizes = [2, 32], strides = [1, 1]} : vector<2x128xf32> to vector<2x32xf32>
    %82 = arith.mulf %81, %70 : vector<2x32xf32>
    %83 = vector.extract_strided_slice %79 {offsets = [0, 0], sizes = [2, 32], strides = [1, 1]} : vector<2x128xf32> to vector<2x32xf32>
    %84 = vector.extract_strided_slice %80 {offsets = [0, 64], sizes = [2, 32], strides = [1, 1]} : vector<2x128xf32> to vector<2x32xf32>
    %85 = arith.mulf %83, %84 : vector<2x32xf32>
    %86 = arith.addf %82, %85 : vector<2x32xf32>
    %87 = vector.extract_strided_slice %79 {offsets = [0, 96], sizes = [2, 32], strides = [1, 1]} : vector<2x128xf32> to vector<2x32xf32>
    %88 = math.tanh %86 : vector<2x32xf32>
    %89 = arith.mulf %87, %88 : vector<2x32xf32>
    %c2_i32 = arith.constant 2 : i32
    %90 = vector.broadcast %c2_i32 : i32 to vector<2x1xi32>
    %91 = arith.cmpi sgt, %2, %90 : vector<2x1xi32>
    %92 = vector.shape_cast %91 : vector<2x1xi1> to vector<2x1xi1>
    %93 = vector.broadcast %92 : vector<2x1xi1> to vector<2x32xi1>
    %94 = arith.select %93, %89, %67 : vector<2x32xi1>, vector<2x32xf32>
    %95 = vector.shape_cast %91 : vector<2x1xi1> to vector<2x1xi1>
    %96 = vector.broadcast %95 : vector<2x1xi1> to vector<2x32xi1>
    %97 = arith.select %96, %86, %70 : vector<2x32xi1>, vector<2x32xf32>
    %98 = vector.extract_strided_slice %13 {offsets = [6, 0], sizes = [2, 128], strides = [1, 1]} : vector<16x256xf32> to vector<2x128xf32>
    %99 = arith.truncf %94 : vector<2x32xf32> to vector<2x32xbf16>
    %cst_13 = arith.constant dense<0.000000e+00> : vector<2x128xf32>
    %100 = tpu.matmul %99, %14, %cst_13 {dimension_numbers = #tpu.dot_dimension_numbers<[1], [0], [0], [1], [0, 0, 1, 1], [], []>} : vector<2x32xbf16>, vector<32x128xbf16>, vector<2x128xf32> -> vector<2x128xf32>
    %101 = arith.addf %98, %100 : vector<2x128xf32>
    %102 = arith.negf %101 : vector<2x128xf32>
    %103 = math.exp %102 : vector<2x128xf32>
    %cst_14 = arith.constant 1.000000e+00 : f32
    %104 = vector.broadcast %cst_14 : f32 to vector<2x128xf32>
    %105 = arith.addf %104, %103 : vector<2x128xf32>
    %106 = arith.divf %104, %105 : vector<2x128xf32>
    %107 = math.tanh %101 : vector<2x128xf32>
    %108 = vector.extract_strided_slice %106 {offsets = [0, 32], sizes = [2, 32], strides = [1, 1]} : vector<2x128xf32> to vector<2x32xf32>
    %109 = arith.mulf %108, %97 : vector<2x32xf32>
    %110 = vector.extract_strided_slice %106 {offsets = [0, 0], sizes = [2, 32], strides = [1, 1]} : vector<2x128xf32> to vector<2x32xf32>
    %111 = vector.extract_strided_slice %107 {offsets = [0, 64], sizes = [2, 32], strides = [1, 1]} : vector<2x128xf32> to vector<2x32xf32>
    %112 = arith.mulf %110, %111 : vector<2x32xf32>
    %113 = arith.addf %109, %112 : vector<2x32xf32>
    %114 = vector.extract_strided_slice %106 {offsets = [0, 96], sizes = [2, 32], strides = [1, 1]} : vector<2x128xf32> to vector<2x32xf32>
    %115 = math.tanh %113 : vector<2x32xf32>
    %116 = arith.mulf %114, %115 : vector<2x32xf32>
    %c3_i32 = arith.constant 3 : i32
    %117 = vector.broadcast %c3_i32 : i32 to vector<2x1xi32>
    %118 = arith.cmpi sgt, %2, %117 : vector<2x1xi32>
    %119 = vector.shape_cast %118 : vector<2x1xi1> to vector<2x1xi1>
    %120 = vector.broadcast %119 : vector<2x1xi1> to vector<2x32xi1>
    %121 = arith.select %120, %116, %94 : vector<2x32xi1>, vector<2x32xf32>
    %122 = vector.shape_cast %118 : vector<2x1xi1> to vector<2x1xi1>
    %123 = vector.broadcast %122 : vector<2x1xi1> to vector<2x32xi1>
    %124 = arith.select %123, %113, %97 : vector<2x32xi1>, vector<2x32xf32>
    %125 = vector.extract_strided_slice %13 {offsets = [8, 0], sizes = [2, 128], strides = [1, 1]} : vector<16x256xf32> to vector<2x128xf32>
    %126 = arith.truncf %121 : vector<2x32xf32> to vector<2x32xbf16>
    %cst_15 = arith.constant dense<0.000000e+00> : vector<2x128xf32>
    %127 = tpu.matmul %126, %14, %cst_15 {dimension_numbers = #tpu.dot_dimension_numbers<[1], [0], [0], [1], [0, 0, 1, 1], [], []>} : vector<2x32xbf16>, vector<32x128xbf16>, vector<2x128xf32> -> vector<2x128xf32>
    %128 = arith.addf %125, %127 : vector<2x128xf32>
    %129 = arith.negf %128 : vector<2x128xf32>
    %130 = math.exp %129 : vector<2x128xf32>
    %cst_16 = arith.constant 1.000000e+00 : f32
    %131 = vector.broadcast %cst_16 : f32 to vector<2x128xf32>
    %132 = arith.addf %131, %130 : vector<2x128xf32>
    %133 = arith.divf %131, %132 : vector<2x128xf32>
    %134 = math.tanh %128 : vector<2x128xf32>
    %135 = vector.extract_strided_slice %133 {offsets = [0, 32], sizes = [2, 32], strides = [1, 1]} : vector<2x128xf32> to vector<2x32xf32>
    %136 = arith.mulf %135, %124 : vector<2x32xf32>
    %137 = vector.extract_strided_slice %133 {offsets = [0, 0], sizes = [2, 32], strides = [1, 1]} : vector<2x128xf32> to vector<2x32xf32>
    %138 = vector.extract_strided_slice %134 {offsets = [0, 64], sizes = [2, 32], strides = [1, 1]} : vector<2x128xf32> to vector<2x32xf32>
    %139 = arith.mulf %137, %138 : vector<2x32xf32>
    %140 = arith.addf %136, %139 : vector<2x32xf32>
    %141 = vector.extract_strided_slice %133 {offsets = [0, 96], sizes = [2, 32], strides = [1, 1]} : vector<2x128xf32> to vector<2x32xf32>
    %142 = math.tanh %140 : vector<2x32xf32>
    %143 = arith.mulf %141, %142 : vector<2x32xf32>
    %c4_i32 = arith.constant 4 : i32
    %144 = vector.broadcast %c4_i32 : i32 to vector<2x1xi32>
    %145 = arith.cmpi sgt, %2, %144 : vector<2x1xi32>
    %146 = vector.shape_cast %145 : vector<2x1xi1> to vector<2x1xi1>
    %147 = vector.broadcast %146 : vector<2x1xi1> to vector<2x32xi1>
    %148 = arith.select %147, %143, %121 : vector<2x32xi1>, vector<2x32xf32>
    %149 = vector.shape_cast %145 : vector<2x1xi1> to vector<2x1xi1>
    %150 = vector.broadcast %149 : vector<2x1xi1> to vector<2x32xi1>
    %151 = arith.select %150, %140, %124 : vector<2x32xi1>, vector<2x32xf32>
    %152 = vector.extract_strided_slice %13 {offsets = [10, 0], sizes = [2, 128], strides = [1, 1]} : vector<16x256xf32> to vector<2x128xf32>
    %153 = arith.truncf %148 : vector<2x32xf32> to vector<2x32xbf16>
    %cst_17 = arith.constant dense<0.000000e+00> : vector<2x128xf32>
    %154 = tpu.matmul %153, %14, %cst_17 {dimension_numbers = #tpu.dot_dimension_numbers<[1], [0], [0], [1], [0, 0, 1, 1], [], []>} : vector<2x32xbf16>, vector<32x128xbf16>, vector<2x128xf32> -> vector<2x128xf32>
    %155 = arith.addf %152, %154 : vector<2x128xf32>
    %156 = arith.negf %155 : vector<2x128xf32>
    %157 = math.exp %156 : vector<2x128xf32>
    %cst_18 = arith.constant 1.000000e+00 : f32
    %158 = vector.broadcast %cst_18 : f32 to vector<2x128xf32>
    %159 = arith.addf %158, %157 : vector<2x128xf32>
    %160 = arith.divf %158, %159 : vector<2x128xf32>
    %161 = math.tanh %155 : vector<2x128xf32>
    %162 = vector.extract_strided_slice %160 {offsets = [0, 32], sizes = [2, 32], strides = [1, 1]} : vector<2x128xf32> to vector<2x32xf32>
    %163 = arith.mulf %162, %151 : vector<2x32xf32>
    %164 = vector.extract_strided_slice %160 {offsets = [0, 0], sizes = [2, 32], strides = [1, 1]} : vector<2x128xf32> to vector<2x32xf32>
    %165 = vector.extract_strided_slice %161 {offsets = [0, 64], sizes = [2, 32], strides = [1, 1]} : vector<2x128xf32> to vector<2x32xf32>
    %166 = arith.mulf %164, %165 : vector<2x32xf32>
    %167 = arith.addf %163, %166 : vector<2x32xf32>
    %168 = vector.extract_strided_slice %160 {offsets = [0, 96], sizes = [2, 32], strides = [1, 1]} : vector<2x128xf32> to vector<2x32xf32>
    %169 = math.tanh %167 : vector<2x32xf32>
    %170 = arith.mulf %168, %169 : vector<2x32xf32>
    %c5_i32 = arith.constant 5 : i32
    %171 = vector.broadcast %c5_i32 : i32 to vector<2x1xi32>
    %172 = arith.cmpi sgt, %2, %171 : vector<2x1xi32>
    %173 = vector.shape_cast %172 : vector<2x1xi1> to vector<2x1xi1>
    %174 = vector.broadcast %173 : vector<2x1xi1> to vector<2x32xi1>
    %175 = arith.select %174, %170, %148 : vector<2x32xi1>, vector<2x32xf32>
    %176 = vector.shape_cast %172 : vector<2x1xi1> to vector<2x1xi1>
    %177 = vector.broadcast %176 : vector<2x1xi1> to vector<2x32xi1>
    %178 = arith.select %177, %167, %151 : vector<2x32xi1>, vector<2x32xf32>
    %179 = vector.extract_strided_slice %13 {offsets = [12, 0], sizes = [2, 128], strides = [1, 1]} : vector<16x256xf32> to vector<2x128xf32>
    %180 = arith.truncf %175 : vector<2x32xf32> to vector<2x32xbf16>
    %cst_19 = arith.constant dense<0.000000e+00> : vector<2x128xf32>
    %181 = tpu.matmul %180, %14, %cst_19 {dimension_numbers = #tpu.dot_dimension_numbers<[1], [0], [0], [1], [0, 0, 1, 1], [], []>} : vector<2x32xbf16>, vector<32x128xbf16>, vector<2x128xf32> -> vector<2x128xf32>
    %182 = arith.addf %179, %181 : vector<2x128xf32>
    %183 = arith.negf %182 : vector<2x128xf32>
    %184 = math.exp %183 : vector<2x128xf32>
    %cst_20 = arith.constant 1.000000e+00 : f32
    %185 = vector.broadcast %cst_20 : f32 to vector<2x128xf32>
    %186 = arith.addf %185, %184 : vector<2x128xf32>
    %187 = arith.divf %185, %186 : vector<2x128xf32>
    %188 = math.tanh %182 : vector<2x128xf32>
    %189 = vector.extract_strided_slice %187 {offsets = [0, 32], sizes = [2, 32], strides = [1, 1]} : vector<2x128xf32> to vector<2x32xf32>
    %190 = arith.mulf %189, %178 : vector<2x32xf32>
    %191 = vector.extract_strided_slice %187 {offsets = [0, 0], sizes = [2, 32], strides = [1, 1]} : vector<2x128xf32> to vector<2x32xf32>
    %192 = vector.extract_strided_slice %188 {offsets = [0, 64], sizes = [2, 32], strides = [1, 1]} : vector<2x128xf32> to vector<2x32xf32>
    %193 = arith.mulf %191, %192 : vector<2x32xf32>
    %194 = arith.addf %190, %193 : vector<2x32xf32>
    %195 = vector.extract_strided_slice %187 {offsets = [0, 96], sizes = [2, 32], strides = [1, 1]} : vector<2x128xf32> to vector<2x32xf32>
    %196 = math.tanh %194 : vector<2x32xf32>
    %197 = arith.mulf %195, %196 : vector<2x32xf32>
    %c6_i32 = arith.constant 6 : i32
    %198 = vector.broadcast %c6_i32 : i32 to vector<2x1xi32>
    %199 = arith.cmpi sgt, %2, %198 : vector<2x1xi32>
    %200 = vector.shape_cast %199 : vector<2x1xi1> to vector<2x1xi1>
    %201 = vector.broadcast %200 : vector<2x1xi1> to vector<2x32xi1>
    %202 = arith.select %201, %197, %175 : vector<2x32xi1>, vector<2x32xf32>
    %203 = vector.shape_cast %199 : vector<2x1xi1> to vector<2x1xi1>
    %204 = vector.broadcast %203 : vector<2x1xi1> to vector<2x32xi1>
    %205 = arith.select %204, %194, %178 : vector<2x32xi1>, vector<2x32xf32>
    %206 = vector.extract_strided_slice %13 {offsets = [14, 0], sizes = [2, 128], strides = [1, 1]} : vector<16x256xf32> to vector<2x128xf32>
    %207 = arith.truncf %202 : vector<2x32xf32> to vector<2x32xbf16>
    %cst_21 = arith.constant dense<0.000000e+00> : vector<2x128xf32>
    %208 = tpu.matmul %207, %14, %cst_21 {dimension_numbers = #tpu.dot_dimension_numbers<[1], [0], [0], [1], [0, 0, 1, 1], [], []>} : vector<2x32xbf16>, vector<32x128xbf16>, vector<2x128xf32> -> vector<2x128xf32>
    %209 = arith.addf %206, %208 : vector<2x128xf32>
    %210 = arith.negf %209 : vector<2x128xf32>
    %211 = math.exp %210 : vector<2x128xf32>
    %cst_22 = arith.constant 1.000000e+00 : f32
    %212 = vector.broadcast %cst_22 : f32 to vector<2x128xf32>
    %213 = arith.addf %212, %211 : vector<2x128xf32>
    %214 = arith.divf %212, %213 : vector<2x128xf32>
    %215 = math.tanh %209 : vector<2x128xf32>
    %216 = vector.extract_strided_slice %214 {offsets = [0, 32], sizes = [2, 32], strides = [1, 1]} : vector<2x128xf32> to vector<2x32xf32>
    %217 = arith.mulf %216, %205 : vector<2x32xf32>
    %218 = vector.extract_strided_slice %214 {offsets = [0, 0], sizes = [2, 32], strides = [1, 1]} : vector<2x128xf32> to vector<2x32xf32>
    %219 = vector.extract_strided_slice %215 {offsets = [0, 64], sizes = [2, 32], strides = [1, 1]} : vector<2x128xf32> to vector<2x32xf32>
    %220 = arith.mulf %218, %219 : vector<2x32xf32>
    %221 = arith.addf %217, %220 : vector<2x32xf32>
    %222 = vector.extract_strided_slice %214 {offsets = [0, 96], sizes = [2, 32], strides = [1, 1]} : vector<2x128xf32> to vector<2x32xf32>
    %223 = math.tanh %221 : vector<2x32xf32>
    %224 = arith.mulf %222, %223 : vector<2x32xf32>
    %c7_i32 = arith.constant 7 : i32
    %225 = vector.broadcast %c7_i32 : i32 to vector<2x1xi32>
    %226 = arith.cmpi sgt, %2, %225 : vector<2x1xi32>
    %227 = vector.shape_cast %226 : vector<2x1xi1> to vector<2x1xi1>
    %228 = vector.broadcast %227 : vector<2x1xi1> to vector<2x32xi1>
    %229 = arith.select %228, %224, %202 : vector<2x32xi1>, vector<2x32xf32>
    %c7_i32_23 = arith.constant 7 : i32
    %230 = vector.broadcast %c7_i32_23 : i32 to vector<2x1xi32>
    %231 = arith.cmpi sgt, %2, %230 : vector<2x1xi32>
    %cst_24 = arith.constant 0.000000e+00 : f32
    %232 = vector.broadcast %cst_24 : f32 to vector<2x32xf32>
    %233 = arith.maximumf %229, %232 : vector<2x32xf32>
    %cst_25 = arith.constant 0.000000e+00 : f32
    %234 = vector.shape_cast %231 : vector<2x1xi1> to vector<2x1xi1>
    %235 = vector.broadcast %234 : vector<2x1xi1> to vector<2x32xi1>
    %236 = vector.broadcast %cst_25 : f32 to vector<2x32xf32>
    %237 = arith.select %235, %233, %236 : vector<2x32xi1>, vector<2x32xf32>
    %238 = vector.extract_strided_slice %13 {offsets = [14, 128], sizes = [2, 128], strides = [1, 1]} : vector<16x256xf32> to vector<2x128xf32>
    %239 = arith.negf %238 : vector<2x128xf32>
    %240 = math.exp %239 : vector<2x128xf32>
    %cst_26 = arith.constant 1.000000e+00 : f32
    %241 = vector.broadcast %cst_26 : f32 to vector<2x128xf32>
    %242 = arith.addf %241, %240 : vector<2x128xf32>
    %243 = arith.divf %241, %242 : vector<2x128xf32>
    %244 = math.tanh %238 : vector<2x128xf32>
    %245 = vector.extract_strided_slice %243 {offsets = [0, 96], sizes = [2, 32], strides = [1, 1]} : vector<2x128xf32> to vector<2x32xf32>
    %246 = vector.extract_strided_slice %243 {offsets = [0, 0], sizes = [2, 32], strides = [1, 1]} : vector<2x128xf32> to vector<2x32xf32>
    %247 = vector.extract_strided_slice %244 {offsets = [0, 64], sizes = [2, 32], strides = [1, 1]} : vector<2x128xf32> to vector<2x32xf32>
    %248 = arith.mulf %246, %247 : vector<2x32xf32>
    %249 = math.tanh %248 : vector<2x32xf32>
    %250 = arith.mulf %245, %249 : vector<2x32xf32>
    %cst_27 = arith.constant 0.000000e+00 : f32
    %251 = vector.broadcast %cst_27 : f32 to vector<2x32xf32>
    %252 = arith.maximumf %250, %251 : vector<2x32xf32>
    %cst_28 = arith.constant 0.000000e+00 : f32
    %253 = vector.shape_cast %231 : vector<2x1xi1> to vector<2x1xi1>
    %254 = vector.broadcast %253 : vector<2x1xi1> to vector<2x32xi1>
    %255 = vector.broadcast %cst_28 : f32 to vector<2x32xf32>
    %256 = arith.select %254, %252, %255 : vector<2x32xi1>, vector<2x32xf32>
    %c0_29 = arith.constant 0 : index
    %c0_30 = arith.constant 0 : index
    %257 = vector.load %arg3[%c0_29, %c0_30] : memref<64x4xbf16, #tpu.memory_space<vmem>>, vector<64x4xbf16>
    %258 = arith.truncf %237 : vector<2x32xf32> to vector<2x32xbf16>
    %259 = vector.extract_strided_slice %257 {offsets = [0, 0], sizes = [32, 4], strides = [1, 1]} : vector<64x4xbf16> to vector<32x4xbf16>
    %cst_31 = arith.constant dense<0.000000e+00> : vector<2x4xf32>
    %260 = tpu.matmul %258, %259, %cst_31 {dimension_numbers = #tpu.dot_dimension_numbers<[1], [0], [0], [1], [0, 0, 1, 1], [], []>} : vector<2x32xbf16>, vector<32x4xbf16>, vector<2x4xf32> -> vector<2x4xf32>
    %261 = arith.truncf %256 : vector<2x32xf32> to vector<2x32xbf16>
    %262 = vector.extract_strided_slice %257 {offsets = [32, 0], sizes = [32, 4], strides = [1, 1]} : vector<64x4xbf16> to vector<32x4xbf16>
    %cst_32 = arith.constant dense<0.000000e+00> : vector<2x4xf32>
    %263 = tpu.matmul %261, %262, %cst_32 {dimension_numbers = #tpu.dot_dimension_numbers<[1], [0], [0], [1], [0, 0, 1, 1], [], []>} : vector<2x32xbf16>, vector<32x4xbf16>, vector<2x4xf32> -> vector<2x4xf32>
    %264 = arith.addf %260, %263 : vector<2x4xf32>
    %c0_33 = arith.constant 0 : index
    %c0_34 = arith.constant 0 : index
    %265 = vector.load %arg4[%c0_33, %c0_34] : memref<1x4xf32, #tpu.memory_space<vmem>>, vector<1x4xf32>
    %266 = vector.broadcast %265 : vector<1x4xf32> to vector<2x4xf32>
    %267 = arith.addf %264, %266 : vector<2x4xf32>
    %c0_35 = arith.constant 0 : index
    %c0_36 = arith.constant 0 : index
    %268 = vector.load %arg5[%c0_35, %c0_36] : memref<2x4xf32, #tpu.memory_space<vmem>>, vector<2x4xf32>
    tpu.vector_store %arg5[%c0_35, %c0_36], %267 {strides = array<i32>} : memref<2x4xf32, #tpu.memory_space<vmem>>, vector<2x4xf32>,
    return
  }
}

</mosaic_0001>

<llo_original>
// kernel: lstm_forward.1
$region0: #{lstm_forward.1}
  #allocation0 [shape = 'u32[]', space=smem, size = 0x4, offset = 0x4, fixed_abs, tag = 'smem constant byte address 0x4 - core index']
  #allocation1 [shape = 'u32[144,128]{1,0:T(1,128)}', space=vmem, size = 0x12000, scoped, tag = 'internal scratch']
  %s0 = inlined_call_operand.vmem [shape: s32[18,1], index: 0, kind: input, shape index: {}]
  %s1 = inlined_call_operand.vmem [shape: bf16[56,256], index: 1, kind: input, shape index: {}]
  %s2 = inlined_call_operand.vmem [shape: bf16[32,128], index: 2, kind: input, shape index: {}]
  %s3 = inlined_call_operand.vmem [shape: bf16[64,4], index: 3, kind: input, shape index: {}]
  %s4 = inlined_call_operand.vmem [shape: f32[1,4], index: 4, kind: input, shape index: {}]
  %s5 = inlined_call_operand.hbm [shape: f32[2,4], index: 5, kind: output, shape index: {}]
  %s6 = sld [smem:[#allocation0]]
  $region30: #{lstm_forward.1} parent=0
    _
  %s8 = ssub.s32 1, %s6
  %s9 = scalar_select 0, %s8, %s6
  $region1: #{lstm_forward.1} parent=0
    #allocation2 [shape = 'u8[1024]{0}', space=vmem, size = 0x400, scoped, tag = 'output window, operand 0, single buffered']
    #allocation3 [shape = 's32[1]{0}', space=sflag, size = 0x4, scoped, tag = 'scoped memory for lstm_forward.1']
    %10 = vsyncpa [#allocation3], 0
    // Predicated region
    $region2: #{lstm_forward.1} parent=1 // pred_check
      _
    $region3: #{lstm_forward.1} parent=1 // pred_check_branch
      %12 = sbr.rel (0) target = $region5
    $region4: #{lstm_forward.1} parent=1 // pred_region
      _
    $region5: #{lstm_forward.1} parent=1 // pred_fallthru
      _
    // Predicated region
    $region6: #{lstm_forward.1} parent=1 // pred_check
      _
    $region7: #{lstm_forward.1} parent=1 // pred_check_branch
      %14 = sbr.rel (0) target = $region9
    $region8: #{lstm_forward.1} parent=1 // pred_region
      _
    $region9: #{lstm_forward.1} parent=1 // pred_fallthru
      _
    // Predicated region
    $region10: #{lstm_forward.1} parent=1 // pred_check
      _
    $region11: #{lstm_forward.1} parent=1 // pred_check_branch
      %16 = sbr.rel (0) target = $region13
    $region12: #{lstm_forward.1} parent=1 // pred_region
      _
    $region13: #{lstm_forward.1} parent=1 // pred_fallthru
      _
    // Predicated region
    $region14: #{lstm_forward.1} parent=1 // pred_check
      _
    $region15: #{lstm_forward.1} parent=1 // pred_check_branch
      %18 = sbr.rel (0) target = $region17
    $region16: #{lstm_forward.1} parent=1 // pred_region
      _
    $region17: #{lstm_forward.1} parent=1 // pred_fallthru
      _
    // Predicated region
    $region18: #{lstm_forward.1} parent=1 // pred_check
      _
    $region19: #{lstm_forward.1} parent=1 // pred_check_branch
      %20 = sbr.rel (0) target = $region21
    $region20: #{lstm_forward.1} parent=1 // pred_region
      _
    $region21: #{lstm_forward.1} parent=1 // pred_fallthru
      _
    %v22 = vld [vmem:[%s0] sm:$0xff]
    %v23 = vld [vmem:[%s0 + $0x8] sm:$0xff]
    %v24 = vld [vmem:[%s0 + $0x10] sm:$0x3]
    %v25 = vlaneseq
    %v26 = vand.u32 %v25, 127
    %27 = vset.pattern.permute.xlu0 0
    %28 = vperm.xlu0 %27, %v22
    %v29 = vpop.permute.xlu0 %28
    %30 = vset.pattern.permute.xlu0 0
    %31 = vperm.xlu0 %30, %v23
    %v32 = vpop.permute.xlu0 %31
    %vm33 = vcmp.eq.s32.totalorder %v29, %v26
    %vm34 = vcmp.eq.s32.totalorder %v32, %v26
    %vm35 = vcmp.eq.s32.totalorder %v26, 55
    %vm36 = vmor %vm33, %vm35
    %vm37 = vmor %vm34, %vm35
    %v38 = vsel %vm36, 1, 0
    %v39 = vsel %vm37, 1, 0
    %v40 = vcvt.s32.f32 %v38
    %v41 = vcvt.s32.f32 %v39
    %v42 = vpack.c.bf16 %v41, %v40
    %v43 = vld [vmem:[%s1] sm:$0xff]
    %v44 = vld [vmem:[%s1 + $0x8] sm:$0xff]
    %v45 = vld [vmem:[%s1 + $0x10] sm:$0xff]
    %v46 = vld [vmem:[%s1 + $0x18] sm:$0xff]
    %v47 = vld [vmem:[%s1 + $0x20] sm:$0xff]
    %v48 = vld [vmem:[%s1 + $0x28] sm:$0xff]
    %v49 = vld [vmem:[%s1 + $0x30] sm:$0xff]
    %v57 = vunpack.c.l.b16 %v43
    %v58 = vunpack.c.h.b16 %v43
    %v59 = vunpack.c.l.b16 %v44
    %v60 = vunpack.c.h.b16 %v44
    %v61 = vunpack.c.l.b16 %v45
    %v62 = vunpack.c.h.b16 %v45
    %v63 = vunpack.c.l.b16 %v46
    %v64 = vunpack.c.h.b16 %v46
    %v65 = vunpack.c.l.b16 %v47
    %v66 = vunpack.c.h.b16 %v47
    %v67 = vunpack.c.l.b16 %v48
    %v68 = vunpack.c.h.b16 %v48
    %v69 = vunpack.c.l.b16 %v49
    %v70 = vunpack.c.h.b16 %v49
    %v71 = vpack.c.b16 %v59, %v57
    %v72 = vpack.c.b16 %v60, %v58
    %v73 = vpack.c.b16 %v63, %v61
    %v74 = vpack.c.b16 %v64, %v62
    %v75 = vpack.c.b16 %v67, %v65
    %v76 = vpack.c.b16 %v68, %v66
    %v77 = vpack.c.b16 %v69, %v69
    %v78 = vpack.c.b16 %v70, %v70
    %vm85 = vcmask 457728
    %v87 = vsel %vm85, %v42, 0
    %vm89 = vcmask 1043456
    %v91 = vsel %vm89, %v77, 0
    %v94 = vsel %vm89, %v78, 0
    %96 = vmatprep.subr.bf16.mxu0 0
    %97 = vmatpush1.bf16.msra.mxu0 0
    %98 = vmatprep.subr.bf16.mxu0 0
    %99 = vmatpush1.bf16.msra.mxu0 0
    %100 = vmatprep.subr.bf16.mxu0 0
    %101 = vmatpush1.bf16.msra.mxu0 0
    %102 = vmatprep.subr.bf16.mxu0 0
    %103 = vmatpush1.bf16.msra.mxu0 0
    %104 = vmatprep.subr.bf16.mxu0 %v94
    %105 = vmatpush1.bf16.msra.mxu0 %v91
    %106 = vmatprep.subr.bf16.mxu0 %v76
    %107 = vmatpush1.bf16.msra.mxu0 %v75
    %108 = vmatprep.subr.bf16.mxu0 %v74
    %109 = vmatpush1.bf16.msra.mxu0 %v73
    %110 = vmatprep.subr.bf16.mxu0 %v72
    %111 = vmatpush1.bf16.msra.mxu0 %v71
    %112 = vmatprep.subr.bf16.mxu0 0
    %113 = vmatpush2.bf16.msra.mxu0 0
    %114 = vmatprep.subr.bf16.mxu0 0
    %115 = vmatpush2.bf16.msra.mxu0 0
    %116 = vmatprep.subr.bf16.mxu0 0
    %117 = vmatpush2.bf16.msra.mxu0 0
    %118 = vmatprep.subr.bf16.mxu0 0
    %119 = vmatpush2.bf16.msra.mxu0 0
    %120 = vmatprep.subr.bf16.mxu0 0
    %121 = vmatpush2.bf16.msra.mxu0 0
    %122 = vmatprep.subr.bf16.mxu0 0
    %123 = vmatpush2.bf16.msra.mxu0 0
    %124 = vmatprep.subr.bf16.mxu0 0
    %125 = vmatpush2.bf16.msra.mxu0 0
    %126 = vmatprep.subr.bf16.mxu0 0
    %127 = vmatpush2.bf16.msra.mxu0 0
    %128 = vmatprep.mubr.bf16.mxu0 0
    %129 = vmatmul.mubr.bf16.gmra.mxu0 %v87
    %v130 = vpop.f32.mrf.mxu0
    %v131 = vadd.f32 0.0, %v130
    %v132 = vpop.f32.mrf.mxu0
    %v133 = vpop.f32.mrf.mxu0
    %v134 = vadd.f32 0.0, %v133
    %v135 = vpop.f32.mrf.mxu0
    %v136 = vadd.f32 0.0, %v135
    %137 = vdwg.mxu0
    %v138 = vld [vmem:[%s2] sm:$0xf]
    %v139 = vld [vmem:[%s2 + $0x4] sm:$0xf]
    %v140 = vld [vmem:[%s2 + $0x8] sm:$0xf]
    %v141 = vld [vmem:[%s2 + $0xc] sm:$0xf]
    %v146 = vunpack.c.l.b16 %v138
    %v147 = vunpack.c.l.b16 %v139
    %v148 = vunpack.c.l.b16 %v140
    %v149 = vunpack.c.l.b16 %v141
    %v150 = vpack.c.b16 %v147, %v146
    %v151 = vpack.c.b16 %v149, %v148
    %vm154 = vcmask 261120
    %v156 = vsel %vm154, 0, 0
    %158 = vmatprep.subr.bf16.mxu0 0
    %159 = vmatpush1.bf16.msra.mxu0 0
    %160 = vmatprep.subr.bf16.mxu0 0
    %161 = vmatpush1.bf16.msra.mxu0 0
    %162 = vmatprep.subr.bf16.mxu0 0
    %163 = vmatpush1.bf16.msra.mxu0 0
    %164 = vmatprep.subr.bf16.mxu0 0
    %165 = vmatpush1.bf16.msra.mxu0 0
    %166 = vmatprep.subr.bf16.mxu0 0
    %167 = vmatpush1.bf16.msra.mxu0 0
    %168 = vmatprep.subr.bf16.mxu0 0
    %169 = vmatpush1.bf16.msra.mxu0 0
    %170 = vmatprep.subr.bf16.mxu0 0
    %171 = vmatpush1.bf16.msra.mxu0 %v151
    %172 = vmatprep.subr.bf16.mxu0 0
    %173 = vmatpush1.bf16.msra.mxu0 %v150
    %174 = vmatprep.subr.bf16.mxu0 0
    %175 = vmatpush2.bf16.msra.mxu0 0
    %176 = vmatprep.subr.bf16.mxu0 0
    %177 = vmatpush2.bf16.msra.mxu0 0
    %178 = vmatprep.subr.bf16.mxu0 0
    %179 = vmatpush2.bf16.msra.mxu0 0
    %180 = vmatprep.subr.bf16.mxu0 0
    %181 = vmatpush2.bf16.msra.mxu0 0
    %182 = vmatprep.subr.bf16.mxu0 0
    %183 = vmatpush2.bf16.msra.mxu0 0
    %184 = vmatprep.subr.bf16.mxu0 0
    %185 = vmatpush2.bf16.msra.mxu0 0
    %186 = vmatprep.subr.bf16.mxu0 0
    %187 = vmatpush2.bf16.msra.mxu0 0
    %188 = vmatprep.subr.bf16.mxu0 0
    %189 = vmatpush2.bf16.msra.mxu0 0
    %190 = vmatprep.mubr.bf16.mxu0 0
    %191 = vmatmul.mubr.bf16.gmra.mxu0 %v156
    %v192 = vpop.f32.mrf.mxu0
    %v193 = vadd.f32 0.0, %v192
    %v194 = vpop.f32.mrf.mxu0
    %v195 = vpop.f32.mrf.mxu0
    %v196 = vpop.f32.mrf.mxu0
    %197 = vdwg.mxu0
    %v198 = vadd.f32 %v131, %v193
    %v199 = vxor.u32 %v198, 2147483648
    %v200 = vmul.f32 %v199, 1.442695
    %v201 = vpow.pop %v200
    %v202 = vadd.f32 %v201, 1.0
    %v203 = vrcp.pop %v202
    %v204 = vmul.f32 1.0, %v203
    %v205 = vtanh.pop %v198
    %v206 = vmul.f32 %v204, 0.0
    %208 = vrot.lane.b32.xlu0 %v205, 64
    %v209 = vpop.permute.xlu0 %208
    %v211 = vmul.f32 %v204, %v209
    %213 = vrot.lane.b32.xlu0 %v211, 32
    %v214 = vpop.permute.xlu0 %213
    %v216 = vadd.f32 %v206, %v214
    %v217 = vtanh.pop %v216
    %219 = vrot.lane.b32.xlu0 %v217, 64
    %v220 = vpop.permute.xlu0 %219
    %v222 = vmul.f32 %v204, %v220
    %vm223 = vcmp.gt.s32.totalorder %v24, 0
    %v224 = vsel %vm223, 1, 0
    %225 = vset.pattern.permute.xlu0 0
    %226 = vperm.xlu0 %225, %v224
    %v227 = vpop.permute.xlu0 %226
    %vm228 = vcmp.eq.s32.totalorder %v227, 1
    %v229 = vsel %vm228, %v222, 0.0
    %v230 = vsel %vm228, %v216, 0.0
    %v231 = vpack.c.bf16 %v229, %v229
    %233 = vrot.lane.b32.xlu0 %v231, 32
    %v234 = vpop.permute.xlu0 %233
    %v236 = vsel %vm154, %v234, 0
    %238 = vmatprep.subr.bf16.mxu0 0
    %239 = vmatpush1.bf16.msra.mxu0 0
    %240 = vmatprep.subr.bf16.mxu0 0
    %241 = vmatpush1.bf16.msra.mxu0 0
    %242 = vmatprep.subr.bf16.mxu0 0
    %243 = vmatpush1.bf16.msra.mxu0 0
    %244 = vmatprep.subr.bf16.mxu0 0
    %245 = vmatpush1.bf16.msra.mxu0 0
    %246 = vmatprep.subr.bf16.mxu0 0
    %247 = vmatpush1.bf16.msra.mxu0 0
    %248 = vmatprep.subr.bf16.mxu0 0
    %249 = vmatpush1.bf16.msra.mxu0 0
    %250 = vmatprep.subr.bf16.mxu0 0
    %251 = vmatpush1.bf16.msra.mxu0 %v151
    %252 = vmatprep.subr.bf16.mxu0 0
    %253 = vmatpush1.bf16.msra.mxu0 %v150
    %254 = vmatprep.subr.bf16.mxu0 0
    %255 = vmatpush2.bf16.msra.mxu0 0
    %256 = vmatprep.subr.bf16.mxu0 0
    %257 = vmatpush2.bf16.msra.mxu0 0
    %258 = vmatprep.subr.bf16.mxu0 0
    %259 = vmatpush2.bf16.msra.mxu0 0
    %260 = vmatprep.subr.bf16.mxu0 0
    %261 = vmatpush2.bf16.msra.mxu0 0
    %262 = vmatprep.subr.bf16.mxu0 0
    %263 = vmatpush2.bf16.msra.mxu0 0
    %264 = vmatprep.subr.bf16.mxu0 0
    %265 = vmatpush2.bf16.msra.mxu0 0
    %266 = vmatprep.subr.bf16.mxu0 0
    %267 = vmatpush2.bf16.msra.mxu0 0
    %268 = vmatprep.subr.bf16.mxu0 0
    %269 = vmatpush2.bf16.msra.mxu0 0
    %270 = vmatprep.mubr.bf16.mxu0 0
    %271 = vmatmul.mubr.bf16.gmra.mxu0 %v236
    %v272 = vpop.f32.mrf.mxu0
    %v273 = vadd.f32 0.0, %v272
    %v274 = vpop.f32.mrf.mxu0
    %v275 = vpop.f32.mrf.mxu0
    %v276 = vpop.f32.mrf.mxu0
    %277 = vdwg.mxu0
    %v279 = vrot.slane %v273, 6
    %v281 = vadd.f32 %v131, %v279
    %v282 = vxor.u32 %v281, 2147483648
    %v283 = vmul.f32 %v282, 1.442695
    %v284 = vpow.pop %v283
    %v285 = vadd.f32 %v284, 1.0
    %v286 = vrcp.pop %v285
    %v287 = vmul.f32 1.0, %v286
    %v288 = vtanh.pop %v281
    %v290 = vrot.slane %v230, 6
    %v292 = vmul.f32 %v287, %v290
    %294 = vrot.lane.b32.xlu0 %v288, 64
    %v295 = vpop.permute.xlu0 %294
    %v297 = vmul.f32 %v287, %v295
    %299 = vrot.lane.b32.xlu0 %v297, 32
    %v300 = vpop.permute.xlu0 %299
    %v302 = vadd.f32 %v292, %v300
    %v303 = vtanh.pop %v302
    %305 = vrot.lane.b32.xlu0 %v303, 64
    %v306 = vpop.permute.xlu0 %305
    %v308 = vmul.f32 %v287, %v306
    %vm309 = vcmp.gt.s32.totalorder %v24, 1
    %v310 = vsel %vm309, 1, 0
    %311 = vset.pattern.permute.xlu0 0
    %312 = vperm.xlu0 %311, %v310
    %v313 = vpop.permute.xlu0 %312
    %vm314 = vcmp.eq.s32.totalorder %v313, 1
    %v316 = vrot.slane %v308, 2
    %317 = vrot.lane.b32.xlu0 %v316, 32
    %v318 = vpop.permute.xlu0 %317
    %321 = vrot.lane.b32.xlu0 %v229, 32
    %v322 = vpop.permute.xlu0 %321
    %v324 = vsel %vm314, %v318, %v322
    %v326 = vrot.slane %v302, 2
    %327 = vrot.lane.b32.xlu0 %v326, 96
    %v328 = vpop.permute.xlu0 %327
    %330 = vrot.lane.b32.xlu0 %v230, 96
    %v331 = vpop.permute.xlu0 %330
    %v333 = vsel %vm314, %v328, %v331
    %v334 = vpack.c.bf16 %v324, %v324
    %v336 = vsel %vm154, %v334, 0
    %338 = vmatprep.subr.bf16.mxu0 0
    %339 = vmatpush1.bf16.msra.mxu0 0
    %340 = vmatprep.subr.bf16.mxu0 0
    %341 = vmatpush1.bf16.msra.mxu0 0
    %342 = vmatprep.subr.bf16.mxu0 0
    %343 = vmatpush1.bf16.msra.mxu0 0
    %344 = vmatprep.subr.bf16.mxu0 0
    %345 = vmatpush1.bf16.msra.mxu0 0
    %346 = vmatprep.subr.bf16.mxu0 0
    %347 = vmatpush1.bf16.msra.mxu0 0
    %348 = vmatprep.subr.bf16.mxu0 0
    %349 = vmatpush1.bf16.msra.mxu0 0
    %350 = vmatprep.subr.bf16.mxu0 0
    %351 = vmatpush1.bf16.msra.mxu0 %v151
    %352 = vmatprep.subr.bf16.mxu0 0
    %353 = vmatpush1.bf16.msra.mxu0 %v150
    %354 = vmatprep.subr.bf16.mxu0 0
    %355 = vmatpush2.bf16.msra.mxu0 0
    %356 = vmatprep.subr.bf16.mxu0 0
    %357 = vmatpush2.bf16.msra.mxu0 0
    %358 = vmatprep.subr.bf16.mxu0 0
    %359 = vmatpush2.bf16.msra.mxu0 0
    %360 = vmatprep.subr.bf16.mxu0 0
    %361 = vmatpush2.bf16.msra.mxu0 0
    %362 = vmatprep.subr.bf16.mxu0 0
    %363 = vmatpush2.bf16.msra.mxu0 0
    %364 = vmatprep.subr.bf16.mxu0 0
    %365 = vmatpush2.bf16.msra.mxu0 0
    %366 = vmatprep.subr.bf16.mxu0 0
    %367 = vmatpush2.bf16.msra.mxu0 0
    %368 = vmatprep.subr.bf16.mxu0 0
    %369 = vmatpush2.bf16.msra.mxu0 0
    %370 = vmatprep.mubr.bf16.mxu0 0
    %371 = vmatmul.mubr.bf16.gmra.mxu0 %v336
    %v372 = vpop.f32.mrf.mxu0
    %v373 = vadd.f32 0.0, %v372
    %v374 = vpop.f32.mrf.mxu0
    %v375 = vpop.f32.mrf.mxu0
    %v376 = vpop.f32.mrf.mxu0
    %377 = vdwg.mxu0
    %v379 = vrot.slane %v373, 4
    %v381 = vadd.f32 %v131, %v379
    %v382 = vxor.u32 %v381, 2147483648
    %v383 = vmul.f32 %v382, 1.442695
    %v384 = vpow.pop %v383
    %v385 = vadd.f32 %v384, 1.0
    %v386 = vrcp.pop %v385
    %v387 = vmul.f32 1.0, %v386
    %v388 = vtanh.pop %v381
    %v390 = vrot.slane %v333, 4
    %391 = vrot.lane.b32.xlu0 %v390, 32
    %v392 = vpop.permute.xlu0 %391
    %v394 = vmul.f32 %v387, %v392
    %396 = vrot.lane.b32.xlu0 %v388, 64
    %v397 = vpop.permute.xlu0 %396
    %v399 = vmul.f32 %v387, %v397
    %401 = vrot.lane.b32.xlu0 %v399, 32
    %v402 = vpop.permute.xlu0 %401
    %v404 = vadd.f32 %v394, %v402
    %v405 = vtanh.pop %v404
    %407 = vrot.lane.b32.xlu0 %v405, 64
    %v408 = vpop.permute.xlu0 %407
    %v410 = vmul.f32 %v387, %v408
    %vm411 = vcmp.gt.s32.totalorder %v24, 2
    %v412 = vsel %vm411, 1, 0
    %413 = vset.pattern.permute.xlu0 0
    %414 = vperm.xlu0 %413, %v412
    %v415 = vpop.permute.xlu0 %414
    %vm416 = vcmp.eq.s32.totalorder %v415, 1
    %v418 = vrot.slane %v410, 4
    %419 = vrot.lane.b32.xlu0 %v418, 32
    %v420 = vpop.permute.xlu0 %419
    %v422 = vsel %vm416, %v420, %v324
    %v424 = vrot.slane %v404, 4
    %425 = vrot.lane.b32.xlu0 %v424, 96
    %v426 = vpop.permute.xlu0 %425
    %v428 = vsel %vm416, %v426, %v333
    %v429 = vpack.c.bf16 %v422, %v422
    %v431 = vsel %vm154, %v429, 0
    %433 = vmatprep.subr.bf16.mxu0 0
    %434 = vmatpush1.bf16.msra.mxu0 0
    %435 = vmatprep.subr.bf16.mxu0 0
    %436 = vmatpush1.bf16.msra.mxu0 0
    %437 = vmatprep.subr.bf16.mxu0 0
    %438 = vmatpush1.bf16.msra.mxu0 0
    %439 = vmatprep.subr.bf16.mxu0 0
    %440 = vmatpush1.bf16.msra.mxu0 0
    %441 = vmatprep.subr.bf16.mxu0 0
    %442 = vmatpush1.bf16.msra.mxu0 0
    %443 = vmatprep.subr.bf16.mxu0 0
    %444 = vmatpush1.bf16.msra.mxu0 0
    %445 = vmatprep.subr.bf16.mxu0 0
    %446 = vmatpush1.bf16.msra.mxu0 %v151
    %447 = vmatprep.subr.bf16.mxu0 0
    %448 = vmatpush1.bf16.msra.mxu0 %v150
    %449 = vmatprep.subr.bf16.mxu0 0
    %450 = vmatpush2.bf16.msra.mxu0 0
    %451 = vmatprep.subr.bf16.mxu0 0
    %452 = vmatpush2.bf16.msra.mxu0 0
    %453 = vmatprep.subr.bf16.mxu0 0
    %454 = vmatpush2.bf16.msra.mxu0 0
    %455 = vmatprep.subr.bf16.mxu0 0
    %456 = vmatpush2.bf16.msra.mxu0 0
    %457 = vmatprep.subr.bf16.mxu0 0
    %458 = vmatpush2.bf16.msra.mxu0 0
    %459 = vmatprep.subr.bf16.mxu0 0
    %460 = vmatpush2.bf16.msra.mxu0 0
    %461 = vmatprep.subr.bf16.mxu0 0
    %462 = vmatpush2.bf16.msra.mxu0 0
    %463 = vmatprep.subr.bf16.mxu0 0
    %464 = vmatpush2.bf16.msra.mxu0 0
    %465 = vmatprep.mubr.bf16.mxu0 0
    %466 = vmatmul.mubr.bf16.gmra.mxu0 %v431
    %v467 = vpop.f32.mrf.mxu0
    %v468 = vadd.f32 0.0, %v467
    %v469 = vpop.f32.mrf.mxu0
    %v470 = vpop.f32.mrf.mxu0
    %v471 = vpop.f32.mrf.mxu0
    %472 = vdwg.mxu0
    %v474 = vrot.slane %v468, 2
    %v476 = vadd.f32 %v131, %v474
    %v477 = vxor.u32 %v476, 2147483648
    %v478 = vmul.f32 %v477, 1.442695
    %v479 = vpow.pop %v478
    %v480 = vadd.f32 %v479, 1.0
    %v481 = vrcp.pop %v480
    %v482 = vmul.f32 1.0, %v481
    %v483 = vtanh.pop %v476
    %v485 = vrot.slane %v428, 2
    %486 = vrot.lane.b32.xlu0 %v485, 32
    %v487 = vpop.permute.xlu0 %486
    %v489 = vmul.f32 %v482, %v487
    %491 = vrot.lane.b32.xlu0 %v483, 64
    %v492 = vpop.permute.xlu0 %491
    %v494 = vmul.f32 %v482, %v492
    %496 = vrot.lane.b32.xlu0 %v494, 32
    %v497 = vpop.permute.xlu0 %496
    %v499 = vadd.f32 %v489, %v497
    %v500 = vtanh.pop %v499
    %502 = vrot.lane.b32.xlu0 %v500, 64
    %v503 = vpop.permute.xlu0 %502
    %v505 = vmul.f32 %v482, %v503
    %vm506 = vcmp.gt.s32.totalorder %v24, 3
    %v507 = vsel %vm506, 1, 0
    %508 = vset.pattern.permute.xlu0 0
    %509 = vperm.xlu0 %508, %v507
    %v510 = vpop.permute.xlu0 %509
    %vm511 = vcmp.eq.s32.totalorder %v510, 1
    %v513 = vrot.slane %v505, 6
    %514 = vrot.lane.b32.xlu0 %v513, 32
    %v515 = vpop.permute.xlu0 %514
    %v517 = vsel %vm511, %v515, %v422
    %v519 = vrot.slane %v499, 6
    %520 = vrot.lane.b32.xlu0 %v519, 96
    %v521 = vpop.permute.xlu0 %520
    %v523 = vsel %vm511, %v521, %v428
    %v524 = vpack.c.bf16 %v517, %v517
    %v526 = vsel %vm154, %v524, 0
    %528 = vmatprep.subr.bf16.mxu0 0
    %529 = vmatpush1.bf16.msra.mxu0 0
    %530 = vmatprep.subr.bf16.mxu0 0
    %531 = vmatpush1.bf16.msra.mxu0 0
    %532 = vmatprep.subr.bf16.mxu0 0
    %533 = vmatpush1.bf16.msra.mxu0 0
    %534 = vmatprep.subr.bf16.mxu0 0
    %535 = vmatpush1.bf16.msra.mxu0 0
    %536 = vmatprep.subr.bf16.mxu0 0
    %537 = vmatpush1.bf16.msra.mxu0 0
    %538 = vmatprep.subr.bf16.mxu0 0
    %539 = vmatpush1.bf16.msra.mxu0 0
    %540 = vmatprep.subr.bf16.mxu0 0
    %541 = vmatpush1.bf16.msra.mxu0 %v151
    %542 = vmatprep.subr.bf16.mxu0 0
    %543 = vmatpush1.bf16.msra.mxu0 %v150
    %544 = vmatprep.subr.bf16.mxu0 0
    %545 = vmatpush2.bf16.msra.mxu0 0
    %546 = vmatprep.subr.bf16.mxu0 0
    %547 = vmatpush2.bf16.msra.mxu0 0
    %548 = vmatprep.subr.bf16.mxu0 0
    %549 = vmatpush2.bf16.msra.mxu0 0
    %550 = vmatprep.subr.bf16.mxu0 0
    %551 = vmatpush2.bf16.msra.mxu0 0
    %552 = vmatprep.subr.bf16.mxu0 0
    %553 = vmatpush2.bf16.msra.mxu0 0
    %554 = vmatprep.subr.bf16.mxu0 0
    %555 = vmatpush2.bf16.msra.mxu0 0
    %556 = vmatprep.subr.bf16.mxu0 0
    %557 = vmatpush2.bf16.msra.mxu0 0
    %558 = vmatprep.subr.bf16.mxu0 0
    %559 = vmatpush2.bf16.msra.mxu0 0
    %560 = vmatprep.mubr.bf16.mxu0 0
    %561 = vmatmul.mubr.bf16.gmra.mxu0 %v526
    %v562 = vpop.f32.mrf.mxu0
    %v563 = vadd.f32 0.0, %v562
    %v564 = vpop.f32.mrf.mxu0
    %v565 = vpop.f32.mrf.mxu0
    %v566 = vpop.f32.mrf.mxu0
    %567 = vdwg.mxu0
    %v568 = vadd.f32 %v134, %v563
    %v569 = vxor.u32 %v568, 2147483648
    %v570 = vmul.f32 %v569, 1.442695
    %v571 = vpow.pop %v570
    %v572 = vadd.f32 %v571, 1.0
    %v573 = vrcp.pop %v572
    %v574 = vmul.f32 1.0, %v573
    %v575 = vtanh.pop %v568
    %577 = vrot.lane.b32.xlu0 %v523, 32
    %v578 = vpop.permute.xlu0 %577
    %v580 = vmul.f32 %v574, %v578
    %582 = vrot.lane.b32.xlu0 %v575, 64
    %v583 = vpop.permute.xlu0 %582
    %v585 = vmul.f32 %v574, %v583
    %587 = vrot.lane.b32.xlu0 %v585, 32
    %v588 = vpop.permute.xlu0 %587
    %v590 = vadd.f32 %v580, %v588
    %v591 = vtanh.pop %v590
    %593 = vrot.lane.b32.xlu0 %v591, 64
    %v594 = vpop.permute.xlu0 %593
    %v596 = vmul.f32 %v574, %v594
    %vm597 = vcmp.gt.s32.totalorder %v24, 4
    %v598 = vsel %vm597, 1, 0
    %599 = vset.pattern.permute.xlu0 0
    %600 = vperm.xlu0 %599, %v598
    %v601 = vpop.permute.xlu0 %600
    %vm602 = vcmp.eq.s32.totalorder %v601, 1
    %604 = vrot.lane.b32.xlu0 %v517, 96
    %v605 = vpop.permute.xlu0 %604
    %v607 = vsel %vm602, %v596, %v605
    %v608 = vsel %vm602, %v590, %v578
    %v609 = vpack.c.bf16 %v607, %v607
    %611 = vrot.lane.b32.xlu0 %v609, 32
    %v612 = vpop.permute.xlu0 %611
    %v614 = vsel %vm154, %v612, 0
    %616 = vmatprep.subr.bf16.mxu0 0
    %617 = vmatpush1.bf16.msra.mxu0 0
    %618 = vmatprep.subr.bf16.mxu0 0
    %619 = vmatpush1.bf16.msra.mxu0 0
    %620 = vmatprep.subr.bf16.mxu0 0
    %621 = vmatpush1.bf16.msra.mxu0 0
    %622 = vmatprep.subr.bf16.mxu0 0
    %623 = vmatpush1.bf16.msra.mxu0 0
    %624 = vmatprep.subr.bf16.mxu0 0
    %625 = vmatpush1.bf16.msra.mxu0 0
    %626 = vmatprep.subr.bf16.mxu0 0
    %627 = vmatpush1.bf16.msra.mxu0 0
    %628 = vmatprep.subr.bf16.mxu0 0
    %629 = vmatpush1.bf16.msra.mxu0 %v151
    %630 = vmatprep.subr.bf16.mxu0 0
    %631 = vmatpush1.bf16.msra.mxu0 %v150
    %632 = vmatprep.subr.bf16.mxu0 0
    %633 = vmatpush2.bf16.msra.mxu0 0
    %634 = vmatprep.subr.bf16.mxu0 0
    %635 = vmatpush2.bf16.msra.mxu0 0
    %636 = vmatprep.subr.bf16.mxu0 0
    %637 = vmatpush2.bf16.msra.mxu0 0
    %638 = vmatprep.subr.bf16.mxu0 0
    %639 = vmatpush2.bf16.msra.mxu0 0
    %640 = vmatprep.subr.bf16.mxu0 0
    %641 = vmatpush2.bf16.msra.mxu0 0
    %642 = vmatprep.subr.bf16.mxu0 0
    %643 = vmatpush2.bf16.msra.mxu0 0
    %644 = vmatprep.subr.bf16.mxu0 0
    %645 = vmatpush2.bf16.msra.mxu0 0
    %646 = vmatprep.subr.bf16.mxu0 0
    %647 = vmatpush2.bf16.msra.mxu0 0
    %648 = vmatprep.mubr.bf16.mxu0 0
    %649 = vmatmul.mubr.bf16.gmra.mxu0 %v614
    %v650 = vpop.f32.mrf.mxu0
    %v651 = vadd.f32 0.0, %v650
    %v652 = vpop.f32.mrf.mxu0
    %v653 = vpop.f32.mrf.mxu0
    %v654 = vpop.f32.mrf.mxu0
    %655 = vdwg.mxu0
    %v657 = vrot.slane %v651, 6
    %v659 = vadd.f32 %v134, %v657
    %v660 = vxor.u32 %v659, 2147483648
    %v661 = vmul.f32 %v660, 1.442695
    %v662 = vpow.pop %v661
    %v663 = vadd.f32 %v662, 1.0
    %v664 = vrcp.pop %v663
    %v665 = vmul.f32 1.0, %v664
    %v666 = vtanh.pop %v659
    %v668 = vrot.slane %v608, 6
    %v670 = vmul.f32 %v665, %v668
    %672 = vrot.lane.b32.xlu0 %v666, 64
    %v673 = vpop.permute.xlu0 %672
    %v675 = vmul.f32 %v665, %v673
    %677 = vrot.lane.b32.xlu0 %v675, 32
    %v678 = vpop.permute.xlu0 %677
    %v680 = vadd.f32 %v670, %v678
    %v681 = vtanh.pop %v680
    %683 = vrot.lane.b32.xlu0 %v681, 64
    %v684 = vpop.permute.xlu0 %683
    %v686 = vmul.f32 %v665, %v684
    %vm687 = vcmp.gt.s32.totalorder %v24, 5
    %v688 = vsel %vm687, 1, 0
    %689 = vset.pattern.permute.xlu0 0
    %690 = vperm.xlu0 %689, %v688
    %v691 = vpop.permute.xlu0 %690
    %vm692 = vcmp.eq.s32.totalorder %v691, 1
    %v694 = vrot.slane %v686, 2
    %695 = vrot.lane.b32.xlu0 %v694, 32
    %v696 = vpop.permute.xlu0 %695
    %699 = vrot.lane.b32.xlu0 %v607, 32
    %v700 = vpop.permute.xlu0 %699
    %v702 = vsel %vm692, %v696, %v700
    %v704 = vrot.slane %v680, 2
    %705 = vrot.lane.b32.xlu0 %v704, 96
    %v706 = vpop.permute.xlu0 %705
    %708 = vrot.lane.b32.xlu0 %v608, 96
    %v709 = vpop.permute.xlu0 %708
    %v711 = vsel %vm692, %v706, %v709
    %v712 = vpack.c.bf16 %v702, %v702
    %v714 = vsel %vm154, %v712, 0
    %716 = vmatprep.subr.bf16.mxu0 0
    %717 = vmatpush1.bf16.msra.mxu0 0
    %718 = vmatprep.subr.bf16.mxu0 0
    %719 = vmatpush1.bf16.msra.mxu0 0
    %720 = vmatprep.subr.bf16.mxu0 0
    %721 = vmatpush1.bf16.msra.mxu0 0
    %722 = vmatprep.subr.bf16.mxu0 0
    %723 = vmatpush1.bf16.msra.mxu0 0
    %724 = vmatprep.subr.bf16.mxu0 0
    %725 = vmatpush1.bf16.msra.mxu0 0
    %726 = vmatprep.subr.bf16.mxu0 0
    %727 = vmatpush1.bf16.msra.mxu0 0
    %728 = vmatprep.subr.bf16.mxu0 0
    %729 = vmatpush1.bf16.msra.mxu0 %v151
    %730 = vmatprep.subr.bf16.mxu0 0
    %731 = vmatpush1.bf16.msra.mxu0 %v150
    %732 = vmatprep.subr.bf16.mxu0 0
    %733 = vmatpush2.bf16.msra.mxu0 0
    %734 = vmatprep.subr.bf16.mxu0 0
    %735 = vmatpush2.bf16.msra.mxu0 0
    %736 = vmatprep.subr.bf16.mxu0 0
    %737 = vmatpush2.bf16.msra.mxu0 0
    %738 = vmatprep.subr.bf16.mxu0 0
    %739 = vmatpush2.bf16.msra.mxu0 0
    %740 = vmatprep.subr.bf16.mxu0 0
    %741 = vmatpush2.bf16.msra.mxu0 0
    %742 = vmatprep.subr.bf16.mxu0 0
    %743 = vmatpush2.bf16.msra.mxu0 0
    %744 = vmatprep.subr.bf16.mxu0 0
    %745 = vmatpush2.bf16.msra.mxu0 0
    %746 = vmatprep.subr.bf16.mxu0 0
    %747 = vmatpush2.bf16.msra.mxu0 0
    %748 = vmatprep.mubr.bf16.mxu0 0
    %749 = vmatmul.mubr.bf16.gmra.mxu0 %v714
    %v750 = vpop.f32.mrf.mxu0
    %v751 = vadd.f32 0.0, %v750
    %v752 = vpop.f32.mrf.mxu0
    %v753 = vpop.f32.mrf.mxu0
    %v754 = vpop.f32.mrf.mxu0
    %755 = vdwg.mxu0
    %v757 = vrot.slane %v751, 4
    %v759 = vadd.f32 %v134, %v757
    %v760 = vxor.u32 %v759, 2147483648
    %v761 = vmul.f32 %v760, 1.442695
    %v762 = vpow.pop %v761
    %v763 = vadd.f32 %v762, 1.0
    %v764 = vrcp.pop %v763
    %v765 = vmul.f32 1.0, %v764
    %v766 = vtanh.pop %v759
    %v768 = vrot.slane %v711, 4
    %769 = vrot.lane.b32.xlu0 %v768, 32
    %v770 = vpop.permute.xlu0 %769
    %v772 = vmul.f32 %v765, %v770
    %774 = vrot.lane.b32.xlu0 %v766, 64
    %v775 = vpop.permute.xlu0 %774
    %v777 = vmul.f32 %v765, %v775
    %779 = vrot.lane.b32.xlu0 %v777, 32
    %v780 = vpop.permute.xlu0 %779
    %v782 = vadd.f32 %v772, %v780
    %v783 = vtanh.pop %v782
    %785 = vrot.lane.b32.xlu0 %v783, 64
    %v786 = vpop.permute.xlu0 %785
    %v788 = vmul.f32 %v765, %v786
    %vm789 = vcmp.gt.s32.totalorder %v24, 6
    %v790 = vsel %vm789, 1, 0
    %791 = vset.pattern.permute.xlu0 0
    %792 = vperm.xlu0 %791, %v790
    %v793 = vpop.permute.xlu0 %792
    %vm794 = vcmp.eq.s32.totalorder %v793, 1
    %v796 = vrot.slane %v788, 4
    %797 = vrot.lane.b32.xlu0 %v796, 32
    %v798 = vpop.permute.xlu0 %797
    %v800 = vsel %vm794, %v798, %v702
    %v802 = vrot.slane %v782, 4
    %803 = vrot.lane.b32.xlu0 %v802, 96
    %v804 = vpop.permute.xlu0 %803
    %v806 = vsel %vm794, %v804, %v711
    %v807 = vpack.c.bf16 %v800, %v800
    %v809 = vsel %vm154, %v807, 0
    %811 = vmatprep.subr.bf16.mxu0 0
    %812 = vmatpush1.bf16.msra.mxu0 0
    %813 = vmatprep.subr.bf16.mxu0 0
    %814 = vmatpush1.bf16.msra.mxu0 0
    %815 = vmatprep.subr.bf16.mxu0 0
    %816 = vmatpush1.bf16.msra.mxu0 0
    %817 = vmatprep.subr.bf16.mxu0 0
    %818 = vmatpush1.bf16.msra.mxu0 0
    %819 = vmatprep.subr.bf16.mxu0 0
    %820 = vmatpush1.bf16.msra.mxu0 0
    %821 = vmatprep.subr.bf16.mxu0 0
    %822 = vmatpush1.bf16.msra.mxu0 0
    %823 = vmatprep.subr.bf16.mxu0 0
    %824 = vmatpush1.bf16.msra.mxu0 %v151
    %825 = vmatprep.subr.bf16.mxu0 0
    %826 = vmatpush1.bf16.msra.mxu0 %v150
    %827 = vmatprep.subr.bf16.mxu0 0
    %828 = vmatpush2.bf16.msra.mxu0 0
    %829 = vmatprep.subr.bf16.mxu0 0
    %830 = vmatpush2.bf16.msra.mxu0 0
    %831 = vmatprep.subr.bf16.mxu0 0
    %832 = vmatpush2.bf16.msra.mxu0 0
    %833 = vmatprep.subr.bf16.mxu0 0
    %834 = vmatpush2.bf16.msra.mxu0 0
    %835 = vmatprep.subr.bf16.mxu0 0
    %836 = vmatpush2.bf16.msra.mxu0 0
    %837 = vmatprep.subr.bf16.mxu0 0
    %838 = vmatpush2.bf16.msra.mxu0 0
    %839 = vmatprep.subr.bf16.mxu0 0
    %840 = vmatpush2.bf16.msra.mxu0 0
    %841 = vmatprep.subr.bf16.mxu0 0
    %842 = vmatpush2.bf16.msra.mxu0 0
    %843 = vmatprep.mubr.bf16.mxu0 0
    %844 = vmatmul.mubr.bf16.gmra.mxu0 %v809
    %v845 = vpop.f32.mrf.mxu0
    %v846 = vadd.f32 0.0, %v845
    %v847 = vpop.f32.mrf.mxu0
    %v848 = vpop.f32.mrf.mxu0
    %v849 = vpop.f32.mrf.mxu0
    %850 = vdwg.mxu0
    %v852 = vrot.slane %v846, 2
    %v854 = vadd.f32 %v134, %v852
    %v855 = vxor.u32 %v854, 2147483648
    %v856 = vmul.f32 %v855, 1.442695
    %v857 = vpow.pop %v856
    %v858 = vadd.f32 %v857, 1.0
    %v859 = vrcp.pop %v858
    %v860 = vmul.f32 1.0, %v859
    %v861 = vtanh.pop %v854
    %v863 = vrot.slane %v806, 2
    %864 = vrot.lane.b32.xlu0 %v863, 32
    %v865 = vpop.permute.xlu0 %864
    %v867 = vmul.f32 %v860, %v865
    %869 = vrot.lane.b32.xlu0 %v861, 64
    %v870 = vpop.permute.xlu0 %869
    %v872 = vmul.f32 %v860, %v870
    %874 = vrot.lane.b32.xlu0 %v872, 32
    %v875 = vpop.permute.xlu0 %874
    %v877 = vadd.f32 %v867, %v875
    %v878 = vtanh.pop %v877
    %880 = vrot.lane.b32.xlu0 %v878, 64
    %v881 = vpop.permute.xlu0 %880
    %v883 = vmul.f32 %v860, %v881
    %vm884 = vcmp.gt.s32.totalorder %v24, 7
    %v885 = vsel %vm884, 1, 0
    %886 = vset.pattern.permute.xlu0 0
    %887 = vperm.xlu0 %886, %v885
    %v888 = vpop.permute.xlu0 %887
    %vm889 = vcmp.eq.s32.totalorder %v888, 1
    %v891 = vrot.slane %v883, 6
    %892 = vrot.lane.b32.xlu0 %v891, 32
    %v893 = vpop.permute.xlu0 %892
    %v895 = vsel %vm889, %v893, %v800
    %v896 = vmax.f32 %v895, 0.0
    %v897 = vsel %vm889, %v896, 0.0
    %v898 = vxor.u32 %v136, 2147483648
    %v899 = vmul.f32 %v898, 1.442695
    %v900 = vpow.pop %v899
    %v901 = vadd.f32 %v900, 1.0
    %v902 = vrcp.pop %v901
    %v903 = vmul.f32 1.0, %v902
    %v904 = vtanh.pop %v136
    %906 = vrot.lane.b32.xlu0 %v904, 64
    %v907 = vpop.permute.xlu0 %906
    %v909 = vmul.f32 %v903, %v907
    %v910 = vtanh.pop %v909
    %912 = vrot.lane.b32.xlu0 %v910, 96
    %v913 = vpop.permute.xlu0 %912
    %v915 = vmul.f32 %v903, %v913
    %v916 = vmax.f32 %v915, 0.0
    %v918 = vrot.slane %v916, 6
    %919 = vrot.lane.b32.xlu0 %v918, 32
    %v920 = vpop.permute.xlu0 %919
    %v922 = vsel %vm889, %v920, 0.0
    %v923 = vld [vmem:[%s3] sm:$0xf]
    %v924 = vld [vmem:[%s3 + $0x4] sm:$0xf]
    %v925 = vld [vmem:[%s3 + $0x8] sm:$0xf]
    %v926 = vld [vmem:[%s3 + $0xc] sm:$0xf]
    %v927 = vld [vmem:[%s3 + $0x10] sm:$0xf]
    %v928 = vld [vmem:[%s3 + $0x14] sm:$0xf]
    %v929 = vld [vmem:[%s3 + $0x18] sm:$0xf]
    %v930 = vld [vmem:[%s3 + $0x1c] sm:$0xf]
    %v931 = vpack.c.bf16 %v897, %v897
    %v932 = vpack.c.bf16 %v922, %v922
    %v937 = vunpack.c.l.b16 %v927
    %v938 = vunpack.c.l.b16 %v928
    %v939 = vunpack.c.l.b16 %v929
    %v940 = vunpack.c.l.b16 %v930
    %v941 = vpack.c.b16 %v938, %v937
    %v942 = vpack.c.b16 %v940, %v939
    %v946 = vsel %vm154, %v932, 0
    %948 = vmatprep.subr.bf16.mxu0 0
    %949 = vmatpush1.bf16.msra.mxu0 0
    %950 = vmatprep.subr.bf16.mxu0 0
    %951 = vmatpush1.bf16.msra.mxu0 0
    %952 = vmatprep.subr.bf16.mxu0 0
    %953 = vmatpush1.bf16.msra.mxu0 0
    %954 = vmatprep.subr.bf16.mxu0 0
    %955 = vmatpush1.bf16.msra.mxu0 0
    %956 = vmatprep.subr.bf16.mxu0 0
    %957 = vmatpush1.bf16.msra.mxu0 0
    %958 = vmatprep.subr.bf16.mxu0 0
    %959 = vmatpush1.bf16.msra.mxu0 0
    %960 = vmatprep.subr.bf16.mxu0 0
    %961 = vmatpush1.bf16.msra.mxu0 %v942
    %962 = vmatprep.subr.bf16.mxu0 0
    %963 = vmatpush1.bf16.msra.mxu0 %v941
    %964 = vmatprep.subr.bf16.mxu0 0
    %965 = vmatpush2.bf16.msra.mxu0 0
    %966 = vmatprep.subr.bf16.mxu0 0
    %967 = vmatpush2.bf16.msra.mxu0 0
    %968 = vmatprep.subr.bf16.mxu0 0
    %969 = vmatpush2.bf16.msra.mxu0 0
    %970 = vmatprep.subr.bf16.mxu0 0
    %971 = vmatpush2.bf16.msra.mxu0 0
    %972 = vmatprep.subr.bf16.mxu0 0
    %973 = vmatpush2.bf16.msra.mxu0 0
    %974 = vmatprep.subr.bf16.mxu0 0
    %975 = vmatpush2.bf16.msra.mxu0 0
    %976 = vmatprep.subr.bf16.mxu0 0
    %977 = vmatpush2.bf16.msra.mxu0 0
    %978 = vmatprep.subr.bf16.mxu0 0
    %979 = vmatpush2.bf16.msra.mxu0 0
    %980 = vmatprep.mubr.bf16.mxu0 0
    %981 = vmatmul.mubr.bf16.gmra.mxu0 %v946
    %v982 = vpop.f32.mrf.mxu0
    %v983 = vadd.f32 0.0, %v982
    %v984 = vpop.f32.mrf.mxu0
    %v985 = vpop.f32.mrf.mxu0
    %v986 = vpop.f32.mrf.mxu0
    %987 = vdwg.mxu0
    %v992 = vunpack.c.l.b16 %v923
    %v993 = vunpack.c.l.b16 %v924
    %v994 = vunpack.c.l.b16 %v925
    %v995 = vunpack.c.l.b16 %v926
    %v996 = vpack.c.b16 %v993, %v992
    %v997 = vpack.c.b16 %v995, %v994
    %v1001 = vsel %vm154, %v931, 0
    %1003 = vmatprep.subr.bf16.mxu0 0
    %1004 = vmatpush1.bf16.msra.mxu0 0
    %1005 = vmatprep.subr.bf16.mxu0 0
    %1006 = vmatpush1.bf16.msra.mxu0 0
    %1007 = vmatprep.subr.bf16.mxu0 0
    %1008 = vmatpush1.bf16.msra.mxu0 0
    %1009 = vmatprep.subr.bf16.mxu0 0
    %1010 = vmatpush1.bf16.msra.mxu0 0
    %1011 = vmatprep.subr.bf16.mxu0 0
    %1012 = vmatpush1.bf16.msra.mxu0 0
    %1013 = vmatprep.subr.bf16.mxu0 0
    %1014 = vmatpush1.bf16.msra.mxu0 0
    %1015 = vmatprep.subr.bf16.mxu0 0
    %1016 = vmatpush1.bf16.msra.mxu0 %v997
    %1017 = vmatprep.subr.bf16.mxu0 0
    %1018 = vmatpush1.bf16.msra.mxu0 %v996
    %1019 = vmatprep.subr.bf16.mxu0 0
    %1020 = vmatpush2.bf16.msra.mxu0 0
    %1021 = vmatprep.subr.bf16.mxu0 0
    %1022 = vmatpush2.bf16.msra.mxu0 0
    %1023 = vmatprep.subr.bf16.mxu0 0
    %1024 = vmatpush2.bf16.msra.mxu0 0
    %1025 = vmatprep.subr.bf16.mxu0 0
    %1026 = vmatpush2.bf16.msra.mxu0 0
    %1027 = vmatprep.subr.bf16.mxu0 0
    %1028 = vmatpush2.bf16.msra.mxu0 0
    %1029 = vmatprep.subr.bf16.mxu0 0
    %1030 = vmatpush2.bf16.msra.mxu0 0
    %1031 = vmatprep.subr.bf16.mxu0 0
    %1032 = vmatpush2.bf16.msra.mxu0 0
    %1033 = vmatprep.subr.bf16.mxu0 0
    %1034 = vmatpush2.bf16.msra.mxu0 0
    %1035 = vmatprep.mubr.bf16.mxu0 0
    %1036 = vmatmul.mubr.bf16.gmra.mxu0 %v1001
    %v1037 = vpop.f32.mrf.mxu0
    %v1038 = vadd.f32 %v983, %v1037
    %v1039 = vpop.f32.mrf.mxu0
    %v1040 = vpop.f32.mrf.mxu0
    %v1041 = vpop.f32.mrf.mxu0
    %1042 = vdwg.mxu0
    %v1043 = vld [vmem:[%s4] sm:$0x1]
    %v1045 = vlaneseq
    %v1046 = vshrl.u32 %v1045, 7
    %v1047 = vsub.s32 0, %v1046
    %v1048 = vrot.slane %v1043, %v1047
    %v1050 = vadd.f32 %v1038, %v1048
    %vm1051 = vcmask 25600
    %1052 = vst.msk [vmem:[#allocation2] sm:$0x3] %vm1051, %v1050
    // Predicated region
    $region22: #{lstm_forward.1} parent=1 // pred_check
      _
    $region23: #{lstm_forward.1} parent=1 // pred_check_branch
      %1054 = sbr.rel (0) target = $region25
    $region24: #{lstm_forward.1} parent=1 // pred_region
      %s1056 = ssub.s32 32, 32
      %1057 = vsyncadd [#allocation3], %s1056
      %s1059 = sshll.u32 [#allocation2], 4
      %s1060 = int_to_ptr.vmem [resolvable:$true] %s1059
      %1062 = dma.vmem_to_hbm [thread:$0]  %s1060, 32, %s5, [#allocation3]
    $region25: #{lstm_forward.1} parent=1 // pred_fallthru
      _
    // Predicated region
    $region26: #{lstm_forward.1} parent=1 // pred_check
      _
    $region27: #{lstm_forward.1} parent=1 // pred_check_branch
      %1064 = sbr.rel (0) target = $region29
    $region28: #{lstm_forward.1} parent=1 // pred_region
      %1065 = dma.done [#allocation3], 32
    $region29: #{lstm_forward.1} parent=1 // pred_fallthru
      _
    %1066 = vsyncpa [#allocation3], 1

</llo_original>
